<compile_context>
chip_gen: v6e
topology: v6e:2x2x1
jax: 0.10.0
libtpu: 0.0.40
codegen_flags: <defaults>
</compile_context>

<pallas_src>
from functools import partial

import jax
import jax.numpy as jnp
from jax.experimental import pallas as pl
from jax.experimental.pallas import tpu as pltpu


def _make_kernel(n, f, h, h2, p):
    """Build the per-graph kernel with static dims baked in."""
    r_wg = 0              # rows [0, f)        : wg  (f, h)
    r_w1 = f              # rows [f, f+h)      : [wa1 | wc1]  (h, 2*h2)
    r_w2 = f + h          # rows [f+h, f+h+h2) : [wa2 | wc2]  (h2, p+1)
    r_b = f + h + h2      # rows r_b, r_b+1, r_b+2 : bg, [ba1|bc1], [ba2|bc2]

    def kernel(adj_ref, x_ref, p_ref, out_ref):
        adj = adj_ref[0]                                   # (n, n), +I already
        x = x_ref[0]                                       # (n, f)

        # --- SimpleGCNConv: row-normalised aggregation + Linear ---
        # deg >= 1 always (self-loops), so the torch.where guard is a no-op.
        deg = jnp.sum(adj, axis=1, keepdims=True)          # (n, 1)
        adj_n = adj * pl.reciprocal(deg, approx=False)

        # Static .at[] views into the packed parameter slab (zero-cost slices).
        wg = p_ref[r_wg:r_wg + f, 0:h]                     # (f, h)
        w1 = p_ref[r_w1:r_w1 + h, 0:2 * h2]                # (h, 2*h2)
        w2 = p_ref[r_w2:r_w2 + h2, 0:p + 1]                # (h2, p+1)
        bg = p_ref[r_b:r_b + 1, 0:h]                       # (1, h)
        b1 = p_ref[r_b + 1:r_b + 2, 0:2 * h2]              # (1, 2*h2)
        b2a = p_ref[r_b + 2:r_b + 3, 0:p]                  # (1, p)
        b2c = p_ref[r_b + 2:r_b + 3, p:p + 1]              # (1, 1)

        agg = jnp.dot(adj_n, x, preferred_element_type=jnp.float32)      # (n, f)
        hid = jnp.dot(agg, wg, preferred_element_type=jnp.float32) + bg
        hid = jnp.maximum(hid, 0.0)                                      # (n, h)

        # --- fused actor-l1 / critic-l1 (single MXU pass) ---
        z = jnp.dot(hid, w1, preferred_element_type=jnp.float32) + b1    # (n, 2*h2)
        a1 = jnp.maximum(z[:, :h2], 0.0)                                 # (n, h2)
        # critic input: mean-pool commutes with Linear (+ per-row bias).
        c1 = jnp.maximum(
            jnp.sum(z[:, h2:], axis=0, keepdims=True) * (1.0 / n), 0.0)  # (1, h2)

        # --- fused actor-l2 / critic-l2 (single MXU pass) ---
        m2 = jnp.concatenate([a1, c1], axis=0)                           # (n+1, h2)
        o2 = jnp.dot(m2, w2, preferred_element_type=jnp.float32)         # (n+1, p+1)
        logits = o2[0:n, 0:p] + b2a                                      # (n, p)
        value = o2[n:n + 1, p:p + 1] + b2c                               # (1, 1)

        # --- softmax over the flattened (n*p) logits ---
        mx = jnp.max(logits, axis=(0, 1), keepdims=True)                 # (1, 1)
        e = jnp.exp(logits - mx)
        se = jnp.sum(e, axis=(0, 1), keepdims=True)                      # (1, 1)
        probs = e * pl.reciprocal(se, approx=False)                      # (n, p)

        # --- lane-dense (n, 128) store: probs in lanes [0, p), value @ [0,127] ---
        slab = jnp.concatenate(
            [probs, jnp.zeros((n, 128 - p), jnp.float32)], axis=1)       # (n, 128)
        row = jax.lax.broadcasted_iota(jnp.int32, (n, 128), 0)
        lane = jax.lax.broadcasted_iota(jnp.int32, (n, 128), 1)
        slab = jnp.where((row == 0) & (lane == 127), value, slab)
        out_ref[0] = slab

    return kernel


@partial(jax.jit, static_argnames=("num_partitions", "hidden_dim"))
def ppo_gnn_forward_batch(x, edge_index, packed, *, num_partitions, hidden_dim):
    """Batched forward.

    x:          (B, N, F) float32 node features
    edge_index: (B, 2, E) int32 edge lists
    packed:     (rows, 128) float32 packed parameter slab (see pack_params)
    returns (action_probs (B, N*P), value (B,))
    """
    b, n, f = x.shape
    h = hidden_dim
    h2 = h // 2
    p = num_partitions
    rows = packed.shape[0]

    # --- adjacency from edge list via one-hot matmul (no XLA scatter) ---
    eye = jnp.eye(n, dtype=jnp.float32)
    if edge_index.shape[2] > 0:
        src_oh = jax.nn.one_hot(edge_index[:, 0, :], n, dtype=jnp.float32)  # (B,E,N)
        dst_oh = jax.nn.one_hot(edge_index[:, 1, :], n, dtype=jnp.float32)  # (B,E,N)
        adj = jnp.einsum('ben,bem->bnm', src_oh, dst_oh)
        adj = jnp.minimum(adj, 1.0)          # assignment semantics for dup edges
        adj = adj + eye[None]                # self-loops (diag=2 if explicit i->i,
                                             # matching the PyTorch reference)
    else:
        adj = jnp.broadcast_to(eye, (b, n, n))

    kernel = _make_kernel(n, f, h, h2, p)

    out = pl.pallas_call(
        kernel,
        out_shape=jax.ShapeDtypeStruct((b, n, 128), jnp.float32),
        grid=(b,),
        in_specs=[
            pl.BlockSpec((1, n, n), lambda i: (i, 0, 0)),
            pl.BlockSpec((1, n, f), lambda i: (i, 0, 0)),
            pl.BlockSpec((rows, 128), lambda i: (0, 0)),   # params: fetched once
        ],
        out_specs=pl.BlockSpec((1, n, 128), lambda i: (i, 0, 0)),
        compiler_params=pltpu.CompilerParams(
            dimension_semantics=("parallel",)),
    )(adj, x, packed)

    action_probs = out[:, :, :p].reshape(b, n * p)
    value = out[:, 0, 127]
    return action_probs, value


def init_params(key, node_feature_dim, num_partitions, hidden_dim):
    """Kaiming-normal (fan_in, relu) weights, zero biases — matches _init_weights.
    Weights stored as (in_features, out_features); biases flat 1-D."""
    def kaiming(k, fan_in, fan_out):
        std = (2.0 / fan_in) ** 0.5
        return std * jax.random.normal(k, (fan_in, fan_out), jnp.float32)

    ks = jax.random.split(key, 5)
    h2 = hidden_dim // 2
    return {
        "wg":  kaiming(ks[0], node_feature_dim, hidden_dim),
        "bg":  jnp.zeros((hidden_dim,), jnp.float32),
        "wa1": kaiming(ks[1], hidden_dim, h2),
        "ba1": jnp.zeros((h2,), jnp.float32),
        "wa2": kaiming(ks[2], h2, num_partitions),
        "ba2": jnp.zeros((num_partitions,), jnp.float32),
        "wc1": kaiming(ks[3], hidden_dim, h2),
        "bc1": jnp.zeros((h2,), jnp.float32),
        "wc2": kaiming(ks[4], h2, 1),
        "bc2": jnp.zeros((1,), jnp.float32),
    }


def pack_params(params, num_partitions, hidden_dim):
    """Pack all weights/biases into a single lane-padded (rows, 128) f32 slab."""
    h = hidden_dim
    h2 = h // 2
    p = num_partitions
    f = params["wg"].shape[0]
    assert h <= 128 and 2 * h2 <= 128 and p + 1 <= 127, "packing assumes <=128 lanes"

    r_b = f + h + h2
    rows = ((r_b + 3 + 7) // 8) * 8
    buf = jnp.zeros((rows, 128), jnp.float32)
    buf = buf.at[0:f, 0:h].set(params["wg"])
    buf = buf.at[f:f + h, 0:2 * h2].set(
        jnp.concatenate([params["wa1"], params["wc1"]], axis=1))
    buf = buf.at[f + h:f + h + h2, 0:p + 1].set(
        jnp.concatenate([params["wa2"], params["wc2"]], axis=1))
    buf = buf.at[r_b, 0:h].set(params["bg"])
    buf = buf.at[r_b + 1, 0:2 * h2].set(
        jnp.concatenate([params["ba1"], params["bc1"]]))
    buf = buf.at[r_b + 2, 0:p + 1].set(
        jnp.concatenate([params["ba2"], params["bc2"]]))
    return buf


if __name__ == "__main__":
    # Small, module-consistent shapes (batched like forward_batch).
    batch = 4
    num_nodes = 8
    node_feature_dim = 16
    num_partitions = 4
    hidden_dim = 32

    key = jax.random.PRNGKey(0)
    k_x, k_p = jax.random.split(key)

    x = jax.random.normal(k_x, (batch, num_nodes, node_feature_dim), jnp.float32)

    # Deterministic ring graph per batch element: i -> (i+1) % N
    src = jnp.arange(num_nodes, dtype=jnp.int32)
    dst = (src + 1) % num_nodes
    ei = jnp.stack([src, dst], axis=0)                          # (2, E)
    edge_index = jnp.broadcast_to(ei[None], (batch, 2, num_nodes)).astype(jnp.int32)

    params = init_params(k_p, node_feature_dim, num_partitions, hidden_dim)
    packed = pack_params(params, num_partitions, hidden_dim)

    action_probs, value = ppo_gnn_forward_batch(
        x, edge_index, packed,
        num_partitions=num_partitions, hidden_dim=hidden_dim)
    jax.block_until_ready((action_probs, value))

    assert action_probs.shape == (batch, num_nodes * num_partitions)
    assert value.shape == (batch,)
    assert bool(jnp.all(jnp.abs(action_probs.sum(axis=-1) - 1.0) < 1e-3))
    # TODO(synk): Categorical sampling / log_prob / entropy (act, evaluate) stay
    # host-side in JAX; only the network forward is a kernel.
    print("KERNEL_OK")
</pallas_src>

<mosaic_0001>
module attributes {stable_mosaic.version = 11 : i64} {
  func.func @kernel(%arg0: i32, %arg1: memref<1x8x8xf32, #tpu.memory_space<vmem>>, %arg2: memref<1x8x16xf32, #tpu.memory_space<vmem>>, %arg3: memref<72x128xf32, #tpu.memory_space<vmem>>, %arg4: memref<1x8x128xf32, #tpu.memory_space<vmem>>) attributes {dimension_semantics = [#tpu.dimension_semantics<parallel>], iteration_bounds = array<i64: 4>, scalar_prefetch = 0 : i64, scratch_operands = 0 : i64, tpu.core_type = #tpu.core_type<tc>, window_params = [{transform_indices = @transform_0, window_bounds = array<i64: 1, 8, 8>}, {transform_indices = @transform_1, window_bounds = array<i64: 1, 8, 16>}, {pipeline_mode = #tpu.pipeline_mode<synchronous>, transform_indices = @transform_2, window_bounds = array<i64: 72, 128>}, {transform_indices = @transform_3, window_bounds = array<i64: 1, 8, 128>}]} {
    %c0 = arith.constant 0 : index
    %c0_0 = arith.constant 0 : index
    %c0_1 = arith.constant 0 : index
    %0 = vector.load %arg1[%c0, %c0_0, %c0_1] : memref<1x8x8xf32, #tpu.memory_space<vmem>>, vector<1x8x8xf32>
    %1 = vector.shape_cast %0 : vector<1x8x8xf32> to vector<8x8xf32>
    %c0_2 = arith.constant 0 : index
    %c0_3 = arith.constant 0 : index
    %c0_4 = arith.constant 0 : index
    %2 = vector.load %arg2[%c0_2, %c0_3, %c0_4] : memref<1x8x16xf32, #tpu.memory_space<vmem>>, vector<1x8x16xf32>
    %3 = vector.shape_cast %2 : vector<1x8x16xf32> to vector<8x16xf32>
    %cst = arith.constant dense<0.000000e+00> : vector<8xf32>
    %4 = vector.multi_reduction <add>, %1, %cst [1] : vector<8x8xf32> to vector<8xf32>
    %5 = vector.shape_cast %4 : vector<8xf32> to vector<8x1xf32>
    %6 = tpu.reciprocal %5 : vector<8x1xf32> -> vector<8x1xf32>
    %7 = vector.broadcast %6 : vector<8x1xf32> to vector<8x8xf32>
    %8 = arith.mulf %1, %7 : vector<8x8xf32>
    %c0_5 = arith.constant 0 : index
    %c0_6 = arith.constant 0 : index
    %9 = vector.load %arg3[%c0_5, %c0_6] : memref<72x128xf32, #tpu.memory_space<vmem>>, vector<16x32xf32>
    %c16 = arith.constant 16 : index
    %c0_7 = arith.constant 0 : index
    %10 = vector.load %arg3[%c16, %c0_7] : memref<72x128xf32, #tpu.memory_space<vmem>>, vector<32x32xf32>
    %c48 = arith.constant 48 : index
    %c0_8 = arith.constant 0 : index
    %11 = vector.load %arg3[%c48, %c0_8] : memref<72x128xf32, #tpu.memory_space<vmem>>, vector<16x5xf32>
    %c64 = arith.constant 64 : index
    %c0_9 = arith.constant 0 : index
    %12 = vector.load %arg3[%c64, %c0_9] : memref<72x128xf32, #tpu.memory_space<vmem>>, vector<1x32xf32>
    %c65 = arith.constant 65 : index
    %c0_10 = arith.constant 0 : index
    %13 = vector.load %arg3[%c65, %c0_10] : memref<72x128xf32, #tpu.memory_space<vmem>>, vector<1x32xf32>
    %c66 = arith.constant 66 : index
    %c0_11 = arith.constant 0 : index
    %14 = vector.load %arg3[%c66, %c0_11] : memref<72x128xf32, #tpu.memory_space<vmem>>, vector<1x4xf32>
    %c66_12 = arith.constant 66 : index
    %c4 = arith.constant 4 : index
    %15 = vector.load %arg3[%c66_12, %c4] : memref<72x128xf32, #tpu.memory_space<vmem>>, vector<1x1xf32>
    %cst_13 = arith.constant dense<0.000000e+00> : vector<8x16xf32>
    %16 = tpu.matmul %8, %3, %cst_13 {dimension_numbers = #tpu.dot_dimension_numbers<[1], [0], [0], [1], [0, 0, 1, 1], [], []>} : vector<8x8xf32>, vector<8x16xf32>, vector<8x16xf32> -> vector<8x16xf32>
    %cst_14 = arith.constant dense<0.000000e+00> : vector<8x32xf32>
    %17 = tpu.matmul %16, %9, %cst_14 {dimension_numbers = #tpu.dot_dimension_numbers<[1], [0], [0], [1], [0, 0, 1, 1], [], []>} : vector<8x16xf32>, vector<16x32xf32>, vector<8x32xf32> -> vector<8x32xf32>
    %18 = vector.broadcast %12 : vector<1x32xf32> to vector<8x32xf32>
    %19 = arith.addf %17, %18 : vector<8x32xf32>
    %cst_15 = arith.constant 0.000000e+00 : f32
    %20 = vector.broadcast %cst_15 : f32 to vector<8x32xf32>
    %21 = arith.maximumf %19, %20 : vector<8x32xf32>
    %cst_16 = arith.constant dense<0.000000e+00> : vector<8x32xf32>
    %22 = tpu.matmul %21, %10, %cst_16 {dimension_numbers = #tpu.dot_dimension_numbers<[1], [0], [0], [1], [0, 0, 1, 1], [], []>} : vector<8x32xf32>, vector<32x32xf32>, vector<8x32xf32> -> vector<8x32xf32>
    %23 = vector.broadcast %13 : vector<1x32xf32> to vector<8x32xf32>
    %24 = arith.addf %22, %23 : vector<8x32xf32>
    %25 = vector.extract_strided_slice %24 {offsets = [0, 0], sizes = [8, 16], strides = [1, 1]} : vector<8x32xf32> to vector<8x16xf32>
    %cst_17 = arith.constant 0.000000e+00 : f32
    %26 = vector.broadcast %cst_17 : f32 to vector<8x16xf32>
    %27 = arith.maximumf %25, %26 : vector<8x16xf32>
    %28 = vector.extract_strided_slice %24 {offsets = [0, 16], sizes = [8, 16], strides = [1, 1]} : vector<8x32xf32> to vector<8x16xf32>
    %cst_18 = arith.constant dense<0.000000e+00> : vector<16xf32>
    %29 = vector.multi_reduction <add>, %28, %cst_18 [0] : vector<8x16xf32> to vector<16xf32>
    %30 = vector.shape_cast %29 : vector<16xf32> to vector<1x16xf32>
    %cst_19 = arith.constant 1.250000e-01 : f32
    %31 = vector.broadcast %cst_19 : f32 to vector<1x16xf32>
    %32 = arith.mulf %30, %31 : vector<1x16xf32>
    %cst_20 = arith.constant 0.000000e+00 : f32
    %33 = vector.broadcast %cst_20 : f32 to vector<1x16xf32>
    %34 = arith.maximumf %32, %33 : vector<1x16xf32>
    %35 = tpu.concatenate %27, %34 in 0 : vector<8x16xf32>, vector<1x16xf32> -> vector<9x16xf32>
    %cst_21 = arith.constant dense<0.000000e+00> : vector<9x5xf32>
    %36 = tpu.matmul %35, %11, %cst_21 {dimension_numbers = #tpu.dot_dimension_numbers<[1], [0], [0], [1], [0, 0, 1, 1], [], []>} : vector<9x16xf32>, vector<16x5xf32>, vector<9x5xf32> -> vector<9x5xf32>
    %37 = vector.extract_strided_slice %36 {offsets = [0, 0], sizes = [8, 4], strides = [1, 1]} : vector<9x5xf32> to vector<8x4xf32>
    %38 = vector.broadcast %14 : vector<1x4xf32> to vector<8x4xf32>
    %39 = arith.addf %37, %38 : vector<8x4xf32>
    %40 = vector.extract_strided_slice %36 {offsets = [8, 4], sizes = [1, 1], strides = [1, 1]} : vector<9x5xf32> to vector<1x1xf32>
    %41 = arith.addf %40, %15 : vector<1x1xf32>
    %42 = vector.shape_cast %39 : vector<8x4xf32> to vector<1x8x4xf32>
    %cst_22 = arith.constant dense<0xFF800000> : vector<1xf32>
    %43 = vector.multi_reduction <maximumf>, %42, %cst_22 [1, 2] : vector<1x8x4xf32> to vector<1xf32>
    %44 = vector.shape_cast %43 : vector<1xf32> to vector<1x1x1xf32>
    %45 = vector.extract %44[0, 0, 0] : f32 from vector<1x1x1xf32>
    %46 = vector.broadcast %45 : f32 to vector<1x1xf32>
    %47 = vector.broadcast %46 : vector<1x1xf32> to vector<8x4xf32>
    %48 = arith.subf %39, %47 : vector<8x4xf32>
    %49 = math.exp %48 : vector<8x4xf32>
    %50 = vector.shape_cast %49 : vector<8x4xf32> to vector<1x8x4xf32>
    %cst_23 = arith.constant dense<0.000000e+00> : vector<1xf32>
    %51 = vector.multi_reduction <add>, %50, %cst_23 [1, 2] : vector<1x8x4xf32> to vector<1xf32>
    %52 = vector.shape_cast %51 : vector<1xf32> to vector<1x1x1xf32>
    %53 = vector.extract %52[0, 0, 0] : f32 from vector<1x1x1xf32>
    %54 = vector.broadcast %53 : f32 to vector<1x1xf32>
    %55 = tpu.reciprocal %54 : vector<1x1xf32> -> vector<1x1xf32>
    %56 = vector.broadcast %55 : vector<1x1xf32> to vector<8x4xf32>
    %57 = arith.mulf %49, %56 : vector<8x4xf32>
    %cst_24 = arith.constant 0.000000e+00 : f32
    %58 = vector.broadcast %cst_24 : f32 to vector<8x124xf32>
    %59 = tpu.concatenate %57, %58 in 1 : vector<8x4xf32>, vector<8x124xf32> -> vector<8x128xf32>
    %60 = tpu.iota {dimensions = array<i32: 0>} : vector<8x128xi32>
    %61 = tpu.iota {dimensions = array<i32: 1>} : vector<8x128xi32>
    %c0_i32 = arith.constant 0 : i32
    %62 = vector.broadcast %c0_i32 : i32 to vector<8x128xi32>
    %63 = arith.cmpi eq, %60, %62 : vector<8x128xi32>
    %c127_i32 = arith.constant 127 : i32
    %64 = vector.broadcast %c127_i32 : i32 to vector<8x128xi32>
    %65 = arith.cmpi eq, %61, %64 : vector<8x128xi32>
    %66 = arith.andi %63, %65 : vector<8x128xi1>
    %67 = vector.shape_cast %41 : vector<1x1xf32> to vector<1x1xf32>
    %68 = vector.broadcast %67 : vector<1x1xf32> to vector<8x128xf32>
    %69 = arith.select %66, %68, %59 : vector<8x128xi1>, vector<8x128xf32>
    %c0_25 = arith.constant 0 : index
    %c0_26 = arith.constant 0 : index
    %c0_27 = arith.constant 0 : index
    %70 = vector.load %arg4[%c0_25, %c0_26, %c0_27] : memref<1x8x128xf32, #tpu.memory_space<vmem>>, vector<1x8x128xf32>
    %71 = vector.shape_cast %70 : vector<1x8x128xf32> to vector<8x128xf32>
    %72 = vector.shape_cast %69 : vector<8x128xf32> to vector<1x8x128xf32>
    tpu.vector_store %arg4[%c0_25, %c0_26, %c0_27], %72 {strides = array<i32>} : memref<1x8x128xf32, #tpu.memory_space<vmem>>, vector<1x8x128xf32>,
    return
  }
  func.func @transform_0(%arg0: i32) -> (i32, i32, i32) {
    %c0_i32 = arith.constant 0 : i32
    %c0_i32_0 = arith.constant 0 : i32
    %c0_i32_1 = arith.constant 0 : i32
    return %arg0, %c0_i32, %c0_i32_0 : i32, i32, i32
  }
  func.func @transform_1(%arg0: i32) -> (i32, i32, i32) {
    %c0_i32 = arith.constant 0 : i32
    %c0_i32_0 = arith.constant 0 : i32
    %c0_i32_1 = arith.constant 0 : i32
    return %arg0, %c0_i32, %c0_i32_0 : i32, i32, i32
  }
  func.func @transform_2(%arg0: i32) -> (i32, i32) {
    %c0_i32 = arith.constant 0 : i32
    %c0_i32_0 = arith.constant 0 : i32
    %c0_i32_1 = arith.constant 0 : i32
    return %c0_i32, %c0_i32_0 : i32, i32
  }
  func.func @transform_3(%arg0: i32) -> (i32, i32, i32) {
    %c0_i32 = arith.constant 0 : i32
    %c0_i32_0 = arith.constant 0 : i32
    %c0_i32_1 = arith.constant 0 : i32
    return %arg0, %c0_i32, %c0_i32_0 : i32, i32, i32
  }
}

</mosaic_0001>

<llo_original>
// kernel: ppo_gnn_forward_batch.1
$region0: #{ppo_gnn_forward_batch.1}
  #allocation0 [shape = 'u32[]', space=smem, size = 0x4, offset = 0x4, fixed_abs, tag = 'smem constant byte address 0x4 - core index']
  #allocation1 [shape = 'u32[144,128]{1,0:T(1,128)}', space=vmem, size = 0x12000, scoped, tag = 'internal scratch']
  %s0 = inlined_call_operand.vmem [shape: f32[4,8,8], index: 0, kind: input, shape index: {}]
  %s1 = inlined_call_operand.hbm [shape: f32[4,8,16], index: 1, kind: input, shape index: {}]
  %s2 = inlined_call_operand.vmem [shape: f32[72,128], index: 2, kind: input, shape index: {}]
  %s3 = inlined_call_operand.vmem [shape: f32[4,8,128], index: 3, kind: output, shape index: {}]
  %s4 = sld [smem:[#allocation0]]
  $region49: #{ppo_gnn_forward_batch.1} parent=0
    _
  %s6 = ssub.s32 1, %s4
  %s7 = scalar_select 0, %s6, %s4
  $region1: #{ppo_gnn_forward_batch.1} parent=0
    #allocation2 [shape = 'u8[8192]{0}', space=vmem, size = 0x2000, scoped, tag = 'input window, operand 1']
    #allocation3 [shape = 's32[2]{0}', space=sflag, size = 0x8, scoped, tag = 'scoped memory for ppo_gnn_forward_batch.1']
    %8 = vsyncpa [#allocation3], 0
    %s9 = scalar_lea.sflag [#allocation3], 1
    %10 = vsyncpa %s9, 0
    loop: start=0, step=1, limit=6
    $region2: #{ppo_gnn_forward_batch.1} parent=1 // loop_pre_header
      _
    $region3: #{ppo_gnn_forward_batch.1} parent=1 // loop_header
      %s12 = sphi 0, %s16
      %p13 = scmp.ge.s32.totalorder %s12, 6
      %s22 = sphi 0, %s24
      %s25 = sphi 0, %s22
      %s26 = sphi 0, %s25
      %s42 = sphi 0, %s26
      %s48 = sphi 0, %s50
      %s51 = sphi 0, %s48
      %s52 = sphi 0, %s51
      %s68 = sphi 0, %s52
      %s72 = sphi 0, %s72
      %s74 = sphi 0, %s72
      %s75 = sphi 0, %s74
      %s89 = sphi 0, %s75
      %s95 = sphi 0, %s97
      %s98 = sphi 0, %s95
      %s99 = sphi 0, %s98
      %s115 = sphi 0, %s99
    $region4: #{ppo_gnn_forward_batch.1} parent=1 // loop_header_branch
      %15 = sbr.rel (%p13) target = $region8
    $region5: #{ppo_gnn_forward_batch.1} parent=1 // loop_body
      %s17 = ssub.s32 %s12, 1
      %s18 = ssub.s32 %s12, 2
      %s19 = sadd.s32 %s12, 1
      %s20 = ssub.s32 %s12, %s19
      %p21 = scmp.eq.s32.totalorder %s20, 0
      %s23 = sadd.s32 %s22, 1
      %s24 = scalar_select %p21, %s22, %s23
      %p27 = pneg %p21
      %p28 = scmp.eq.s32.totalorder %s12, 3
      %p29 = por %p27, %p28
      %p30 = scmp.ne.s32.totalorder %s22, %s25
      %p31 = scmp.eq.s32.totalorder %s12, 0
      %p32 = por %p30, %p31
      %p33 = scmp.ne.s32.totalorder %s22, %s25
      %p34 = scmp.eq.s32.totalorder %s17, 3
      %p35 = por %p33, %p34
      %p36 = scmp.ne.s32.totalorder %s25, %s26
      %p37 = scmp.eq.s32.totalorder %s17, 0
      %p38 = por %p36, %p37
      %p39 = scmp.ne.s32.totalorder %s25, %s26
      %p40 = scmp.eq.s32.totalorder %s18, 3
      %p41 = por %p39, %p40
      %p43 = scmp.ne.s32.totalorder %s26, %s42
      %p44 = scmp.eq.s32.totalorder %s18, 0
      %p45 = por %p43, %p44
      %s46 = ssub.s32 %s12, %s19
      %p47 = scmp.eq.s32.totalorder %s46, 0
      %s49 = sadd.s32 %s48, 1
      %s50 = scalar_select %p47, %s48, %s49
      %p53 = pneg %p47
      %p54 = scmp.eq.s32.totalorder %s12, 3
      %p55 = por %p53, %p54
      %p56 = scmp.ne.s32.totalorder %s48, %s51
      %p57 = scmp.eq.s32.totalorder %s12, 0
      %p58 = por %p56, %p57
      %p59 = scmp.ne.s32.totalorder %s48, %s51
      %p60 = scmp.eq.s32.totalorder %s17, 3
      %p61 = por %p59, %p60
      %p62 = scmp.ne.s32.totalorder %s51, %s52
      %p63 = scmp.eq.s32.totalorder %s17, 0
      %p64 = por %p62, %p63
      %p65 = scmp.ne.s32.totalorder %s51, %s52
      %p66 = scmp.eq.s32.totalorder %s18, 3
      %p67 = por %p65, %p66
      %p69 = scmp.ne.s32.totalorder %s52, %s68
      %p70 = scmp.eq.s32.totalorder %s18, 0
      %p71 = por %p69, %p70
      %s73 = sadd.s32 %s72, 1
      %p76 = scmp.eq.s32.totalorder %s12, 3
      %p77 = scmp.ne.s32.totalorder %s72, %s74
      %p78 = scmp.eq.s32.totalorder %s12, 0
      %p79 = por %p77, %p78
      %p80 = scmp.ne.s32.totalorder %s72, %s74
      %p81 = scmp.eq.s32.totalorder %s17, 3
      %p82 = por %p80, %p81
      %p83 = scmp.ne.s32.totalorder %s74, %s75
      %p84 = scmp.eq.s32.totalorder %s17, 0
      %p85 = por %p83, %p84
      %p86 = scmp.ne.s32.totalorder %s74, %s75
      %p87 = scmp.eq.s32.totalorder %s18, 3
      %p88 = por %p86, %p87
      %p90 = scmp.ne.s32.totalorder %s75, %s89
      %p91 = scmp.eq.s32.totalorder %s18, 0
      %p92 = por %p90, %p91
      %s93 = ssub.s32 %s12, %s19
      %p94 = scmp.eq.s32.totalorder %s93, 0
      %s96 = sadd.s32 %s95, 1
      %s97 = scalar_select %p94, %s95, %s96
      %p100 = pneg %p94
      %p101 = scmp.eq.s32.totalorder %s12, 3
      %p102 = por %p100, %p101
      %p103 = scmp.ne.s32.totalorder %s95, %s98
      %p104 = scmp.eq.s32.totalorder %s12, 0
      %p105 = por %p103, %p104
      %p106 = scmp.ne.s32.totalorder %s95, %s98
      %p107 = scmp.eq.s32.totalorder %s17, 3
      %p108 = por %p106, %p107
      %p109 = scmp.ne.s32.totalorder %s98, %s99
      %p110 = scmp.eq.s32.totalorder %s17, 0
      %p111 = por %p109, %p110
      %p112 = scmp.ne.s32.totalorder %s98, %s99
      %p113 = scmp.eq.s32.totalorder %s18, 3
      %p114 = por %p112, %p113
      %p116 = scmp.ne.s32.totalorder %s99, %s115
      %p117 = scmp.eq.s32.totalorder %s18, 0
      %p118 = por %p116, %p117
      %p119 = scmp.le.s32.totalorder 1, %s12
      %p120 = scmp.lt.s32.totalorder %s12, 5
      %p121 = pnand %p119, %p120
      %p122 = pneg %p121
      // Predicated region
      $region9: #{ppo_gnn_forward_batch.1} parent=5 // pred_check
        _
      $region10: #{ppo_gnn_forward_batch.1} parent=5 // pred_check_branch
        %124 = sbr.rel (%p121) target = $region12
      $region11: #{ppo_gnn_forward_batch.1} parent=5 // pred_region
        %s125 = ssub.s32 %s12, 1
        // Predicated region
        $region13: #{ppo_gnn_forward_batch.1} parent=11 // pred_check
          %p126 = pneg %p85
        $region14: #{ppo_gnn_forward_batch.1} parent=11 // pred_check_branch
          %128 = sbr.rel (%p126) target = $region16
        $region15: #{ppo_gnn_forward_batch.1} parent=11 // pred_region
          _
        $region16: #{ppo_gnn_forward_batch.1} parent=11 // pred_fallthru
          _
      $region12: #{ppo_gnn_forward_batch.1} parent=5 // pred_fallthru
        _
      %p129 = scmp.lt.s32.totalorder %s12, 4
      // Predicated region
      $region17: #{ppo_gnn_forward_batch.1} parent=5 // pred_check
        %p130 = pneg %p129
      $region18: #{ppo_gnn_forward_batch.1} parent=5 // pred_check_branch
        %132 = sbr.rel (%p130) target = $region20
      $region19: #{ppo_gnn_forward_batch.1} parent=5 // pred_region
        // Predicated region
        $region21: #{ppo_gnn_forward_batch.1} parent=19 // pred_check
          %p133 = pneg %p32
        $region22: #{ppo_gnn_forward_batch.1} parent=19 // pred_check_branch
          %135 = sbr.rel (%p133) target = $region24
        $region23: #{ppo_gnn_forward_batch.1} parent=19 // pred_region
          %p136 = scmp.lt.s32.totalorder %s12, 3
          %s137 = scalar_select %p136, %s12, 3
          %s138 = smul.addr %s137, 8
          %s139 = scalar_lea.vmem %s0, %s138
        $region24: #{ppo_gnn_forward_batch.1} parent=19 // pred_fallthru
          _
        // Predicated region
        $region25: #{ppo_gnn_forward_batch.1} parent=19 // pred_check
          %p140 = pneg %p58
        $region26: #{ppo_gnn_forward_batch.1} parent=19 // pred_check_branch
          %142 = sbr.rel (%p140) target = $region28
        $region27: #{ppo_gnn_forward_batch.1} parent=19 // pred_region
          %s143 = sand.u32 %s48, 1
          %s144 = scalar_lea.sflag [#allocation3], %s143
          %s145 = sand.u32 %s48, 1
          %s146 = smul.addr %s145, 8
          %s147 = scalar_lea.vmem [#allocation2], %s146
          %s149 = ssub.s32 128, 128
          %150 = vsyncadd %s144, %s149
          %s151 = smul.addr %s12, 128
          %s152 = scalar_lea.hbm %s1, %s151
          %s154 = sshll.u32 %s147, 4
          %s155 = int_to_ptr.vmem [resolvable:$true] %s154
          %157 = dma.hbm_to_vmem [thread:$0]  %s152, 128, %s155, %s144
        $region28: #{ppo_gnn_forward_batch.1} parent=19 // pred_fallthru
          _
      $region20: #{ppo_gnn_forward_batch.1} parent=5 // pred_fallthru
        _
      %p158 = scmp.le.s32.totalorder 1, %s12
      %p159 = scmp.lt.s32.totalorder %s12, 5
      %p160 = pnand %p158, %p159
      %p161 = pneg %p160
      // Predicated region
      $region29: #{ppo_gnn_forward_batch.1} parent=5 // pred_check
        _
      $region30: #{ppo_gnn_forward_batch.1} parent=5 // pred_check_branch
        %163 = sbr.rel (%p160) target = $region32
      $region31: #{ppo_gnn_forward_batch.1} parent=5 // pred_region
        %s164 = ssub.s32 %s12, 1
        %s165 = sand.u32 %s51, 1
        %s166 = scalar_lea.sflag [#allocation3], %s165
        %s167 = sand.u32 %s51, 1
        %s168 = smul.addr %s167, 8
        %s169 = scalar_lea.vmem [#allocation2], %s168
        // Predicated region
        $region33: #{ppo_gnn_forward_batch.1} parent=31 // pred_check
          %p170 = pneg %p64
        $region34: #{ppo_gnn_forward_batch.1} parent=31 // pred_check_branch
          %172 = sbr.rel (%p170) target = $region36
        $region35: #{ppo_gnn_forward_batch.1} parent=31 // pred_region
          %173 = dma.done %s166, 128
        $region36: #{ppo_gnn_forward_batch.1} parent=31 // pred_fallthru
          _
        %p174 = scmp.lt.s32.totalorder %s17, 3
        %s175 = scalar_select %p174, %s17, 3
        %s176 = smul.addr %s175, 8
        %s177 = scalar_lea.vmem %s0, %s176
        %p178 = pneg %p38
        %p179 = pneg %p35
        %s180 = sand.u32 %s51, 1
        %s181 = scalar_lea.sflag [#allocation3], %s180
        %s182 = sand.u32 %s51, 1
        %s183 = smul.addr %s182, 8
        %s184 = scalar_lea.vmem [#allocation2], %s183
        %p185 = pneg %p64
        %p186 = pneg %p61
        %p187 = pneg %p85
        %p188 = pneg %p82
        %p189 = pneg %p111
        %p190 = pneg %p108
        %p191 = scmp.lt.s32.totalorder %s17, 3
        %s192 = scalar_select %p191, %s17, 3
        %s193 = smul.addr %s192, 8
        %s194 = scalar_lea.vmem %s3, %s193
        %p195 = scmp.lt.s32.totalorder %s17, 3
        %s196 = scalar_select %p195, %s17, 3
        %s197 = smul.addr %s196, 8
        %s198 = scalar_lea.vmem %s0, %s197
        %p199 = scmp.lt.s32.totalorder %s17, 3
        %s200 = scalar_select %p199, %s17, 3
        %s201 = smul.addr %s200, 8
        %s202 = scalar_lea.vmem %s3, %s201
        %v203 = vld [vmem:[%s198] sm:$0xff]
        %v204 = vld [vmem:[%s169] sm:$0xff]
        %vm205 = vcmask 64512
        %v206 = vsel %vm205, %v203, 0.0
        %207 = vadd.xlane.f32.xlu0 %v206
        %v208 = vpop.xlane.xlu0 %207
        %v209 = vrcp.pop %v208
        %v210 = vmul.f32 %v203, %v209
        %v211 = vld [vmem:[%s2] sm:$0xff]
        %v212 = vld [vmem:[%s2 + $0x8] sm:$0xff]
        %v213 = vld [vmem:[%s2 + $0x10] sm:$0xff]
        %v214 = vld [vmem:[%s2 + $0x18] sm:$0xff]
        %v215 = vld [vmem:[%s2 + $0x20] sm:$0xff]
        %v216 = vld [vmem:[%s2 + $0x28] sm:$0xff]
        %v217 = vld [vmem:[%s2 + $0x30] sm:$0xff]
        %v218 = vld [vmem:[%s2 + $0x38] sm:$0xff]
        %v219 = vld [vmem:[%s2 + $0x40] sm:$0x1]
        %v220 = vld [vmem:[%s2 + $0x41] sm:$0x1]
        %v221 = vld [vmem:[%s2 + $0x42] sm:$0x1]
        %v223 = vsel %vm205, %v210, 0
        %225 = vmatprep.subr.mxu0 0.0
        %226 = vmatpush1.msra.mxu0 0.0
        %227 = vmatprep.subr.mxu0 0.0
        %228 = vmatpush1.msra.mxu0 0.0
        %229 = vmatprep.subr.mxu0 0.0
        %230 = vmatpush1.msra.mxu0 0.0
        %231 = vmatprep.subr.mxu0 0.0
        %232 = vmatpush1.msra.mxu0 0.0
        %233 = vmatprep.subr.mxu0 0.0
        %234 = vmatpush1.msra.mxu0 0.0
        %235 = vmatprep.subr.mxu0 0.0
        %236 = vmatpush1.msra.mxu0 0.0
        %237 = vmatprep.subr.mxu0 0.0
        %238 = vmatpush1.msra.mxu0 0.0
        %239 = vmatprep.subr.mxu0 0.0
        %240 = vmatpush1.msra.mxu0 0.0
        %241 = vmatprep.subr.mxu0 0.0
        %242 = vmatpush1.msra.mxu0 0.0
        %243 = vmatprep.subr.mxu0 0.0
        %244 = vmatpush1.msra.mxu0 0.0
        %245 = vmatprep.subr.mxu0 0.0
        %246 = vmatpush1.msra.mxu0 0.0
        %247 = vmatprep.subr.mxu0 0.0
        %248 = vmatpush1.msra.mxu0 0.0
        %249 = vmatprep.subr.mxu0 0.0
        %250 = vmatpush1.msra.mxu0 0.0
        %251 = vmatprep.subr.mxu0 0.0
        %252 = vmatpush1.msra.mxu0 0.0
        %253 = vmatprep.subr.mxu0 0.0
        %254 = vmatpush1.msra.mxu0 0.0
        %255 = vmatprep.subr.mxu0 0.0
        %256 = vmatpush1.msra.mxu0 %v204
        %257 = vmatprep.subr.mxu0 0.0
        %258 = vmatpush2.msra.mxu0 0.0
        %259 = vmatprep.subr.mxu0 0.0
        %260 = vmatpush2.msra.mxu0 0.0
        %261 = vmatprep.subr.mxu0 0.0
        %262 = vmatpush2.msra.mxu0 0.0
        %263 = vmatprep.subr.mxu0 0.0
        %264 = vmatpush2.msra.mxu0 0.0
        %265 = vmatprep.subr.mxu0 0.0
        %266 = vmatpush2.msra.mxu0 0.0
        %267 = vmatprep.subr.mxu0 0.0
        %268 = vmatpush2.msra.mxu0 0.0
        %269 = vmatprep.subr.mxu0 0.0
        %270 = vmatpush2.msra.mxu0 0.0
        %271 = vmatprep.subr.mxu0 0.0
        %272 = vmatpush2.msra.mxu0 0.0
        %273 = vmatprep.subr.mxu0 0.0
        %274 = vmatpush2.msra.mxu0 0.0
        %275 = vmatprep.subr.mxu0 0.0
        %276 = vmatpush2.msra.mxu0 0.0
        %277 = vmatprep.subr.mxu0 0.0
        %278 = vmatpush2.msra.mxu0 0.0
        %279 = vmatprep.subr.mxu0 0.0
        %280 = vmatpush2.msra.mxu0 0.0
        %281 = vmatprep.subr.mxu0 0.0
        %282 = vmatpush2.msra.mxu0 0.0
        %283 = vmatprep.subr.mxu0 0.0
        %284 = vmatpush2.msra.mxu0 0.0
        %285 = vmatprep.subr.mxu0 0.0
        %286 = vmatpush2.msra.mxu0 0.0
        %287 = vmatprep.subr.mxu0 0.0
        %288 = vmatpush2.msra.mxu0 0.0
        %289 = vmatprep.mubr.f32.mxu0 0.0
        %290 = vmatmul.mubr.f32.gmra.mxu0 %v223
        %v291 = vpop.f32.mrf.mxu0
        %v292 = vadd.f32 0.0, %v291
        %v293 = vpop.f32.mrf.mxu0
        %294 = vdwg.mxu0
        %v295 = vlaneseq
        %v296 = vshrl.u32 %v295, 7
        %v297 = vsub.s32 0, %v296
        %v298 = vrot.slane %v219, %v297
        %vm299 = vcmask 130048
        %v301 = vsel %vm299, %v292, 0
        %303 = vmatprep.subr.mxu0 0.0
        %304 = vmatpush1.msra.mxu0 0.0
        %305 = vmatprep.subr.mxu0 0.0
        %306 = vmatpush1.msra.mxu0 0.0
        %307 = vmatprep.subr.mxu0 0.0
        %308 = vmatpush1.msra.mxu0 0.0
        %309 = vmatprep.subr.mxu0 0.0
        %310 = vmatpush1.msra.mxu0 0.0
        %311 = vmatprep.subr.mxu0 0.0
        %312 = vmatpush1.msra.mxu0 0.0
        %313 = vmatprep.subr.mxu0 0.0
        %314 = vmatpush1.msra.mxu0 0.0
        %315 = vmatprep.subr.mxu0 0.0
        %316 = vmatpush1.msra.mxu0 0.0
        %317 = vmatprep.subr.mxu0 0.0
        %318 = vmatpush1.msra.mxu0 0.0
        %319 = vmatprep.subr.mxu0 0.0
        %320 = vmatpush1.msra.mxu0 0.0
        %321 = vmatprep.subr.mxu0 0.0
        %322 = vmatpush1.msra.mxu0 0.0
        %323 = vmatprep.subr.mxu0 0.0
        %324 = vmatpush1.msra.mxu0 0.0
        %325 = vmatprep.subr.mxu0 0.0
        %326 = vmatpush1.msra.mxu0 0.0
        %327 = vmatprep.subr.mxu0 0.0
        %328 = vmatpush1.msra.mxu0 0.0
        %329 = vmatprep.subr.mxu0 0.0
        %330 = vmatpush1.msra.mxu0 0.0
        %331 = vmatprep.subr.mxu0 0.0
        %332 = vmatpush1.msra.mxu0 %v212
        %333 = vmatprep.subr.mxu0 0.0
        %334 = vmatpush1.msra.mxu0 %v211
        %335 = vmatprep.subr.mxu0 0.0
        %336 = vmatpush2.msra.mxu0 0.0
        %337 = vmatprep.subr.mxu0 0.0
        %338 = vmatpush2.msra.mxu0 0.0
        %339 = vmatprep.subr.mxu0 0.0
        %340 = vmatpush2.msra.mxu0 0.0
        %341 = vmatprep.subr.mxu0 0.0
        %342 = vmatpush2.msra.mxu0 0.0
        %343 = vmatprep.subr.mxu0 0.0
        %344 = vmatpush2.msra.mxu0 0.0
        %345 = vmatprep.subr.mxu0 0.0
        %346 = vmatpush2.msra.mxu0 0.0
        %347 = vmatprep.subr.mxu0 0.0
        %348 = vmatpush2.msra.mxu0 0.0
        %349 = vmatprep.subr.mxu0 0.0
        %350 = vmatpush2.msra.mxu0 0.0
        %351 = vmatprep.subr.mxu0 0.0
        %352 = vmatpush2.msra.mxu0 0.0
        %353 = vmatprep.subr.mxu0 0.0
        %354 = vmatpush2.msra.mxu0 0.0
        %355 = vmatprep.subr.mxu0 0.0
        %356 = vmatpush2.msra.mxu0 0.0
        %357 = vmatprep.subr.mxu0 0.0
        %358 = vmatpush2.msra.mxu0 0.0
        %359 = vmatprep.subr.mxu0 0.0
        %360 = vmatpush2.msra.mxu0 0.0
        %361 = vmatprep.subr.mxu0 0.0
        %362 = vmatpush2.msra.mxu0 0.0
        %363 = vmatprep.subr.mxu0 0.0
        %364 = vmatpush2.msra.mxu0 0.0
        %365 = vmatprep.subr.mxu0 0.0
        %366 = vmatpush2.msra.mxu0 0.0
        %367 = vmatprep.mubr.f32.mxu0 0.0
        %368 = vmatmul.mubr.f32.gmra.mxu0 %v301
        %v369 = vpop.f32.mrf.mxu0
        %v370 = vadd.f32 %v298, %v369
        %v371 = vpop.f32.mrf.mxu0
        %372 = vdwg.mxu0
        %v373 = vmax.f32 %v370, 0.0
        %v374 = vlaneseq
        %v375 = vshrl.u32 %v374, 7
        %v376 = vsub.s32 0, %v375
        %v377 = vrot.slane %v220, %v376
        %vm378 = vcmask 261120
        %v380 = vsel %vm378, %v373, 0
        %382 = vmatprep.subr.mxu0 0.0
        %383 = vmatpush1.msra.mxu0 0.0
        %384 = vmatprep.subr.mxu0 0.0
        %385 = vmatpush1.msra.mxu0 0.0
        %386 = vmatprep.subr.mxu0 0.0
        %387 = vmatpush1.msra.mxu0 0.0
        %388 = vmatprep.subr.mxu0 0.0
        %389 = vmatpush1.msra.mxu0 0.0
        %390 = vmatprep.subr.mxu0 0.0
        %391 = vmatpush1.msra.mxu0 0.0
        %392 = vmatprep.subr.mxu0 0.0
        %393 = vmatpush1.msra.mxu0 0.0
        %394 = vmatprep.subr.mxu0 0.0
        %395 = vmatpush1.msra.mxu0 0.0
        %396 = vmatprep.subr.mxu0 0.0
        %397 = vmatpush1.msra.mxu0 0.0
        %398 = vmatprep.subr.mxu0 0.0
        %399 = vmatpush1.msra.mxu0 0.0
        %400 = vmatprep.subr.mxu0 0.0
        %401 = vmatpush1.msra.mxu0 0.0
        %402 = vmatprep.subr.mxu0 0.0
        %403 = vmatpush1.msra.mxu0 0.0
        %404 = vmatprep.subr.mxu0 0.0
        %405 = vmatpush1.msra.mxu0 0.0
        %406 = vmatprep.subr.mxu0 0.0
        %407 = vmatpush1.msra.mxu0 %v216
        %408 = vmatprep.subr.mxu0 0.0
        %409 = vmatpush1.msra.mxu0 %v215
        %410 = vmatprep.subr.mxu0 0.0
        %411 = vmatpush1.msra.mxu0 %v214
        %412 = vmatprep.subr.mxu0 0.0
        %413 = vmatpush1.msra.mxu0 %v213
        %414 = vmatprep.subr.mxu0 0.0
        %415 = vmatpush2.msra.mxu0 0.0
        %416 = vmatprep.subr.mxu0 0.0
        %417 = vmatpush2.msra.mxu0 0.0
        %418 = vmatprep.subr.mxu0 0.0
        %419 = vmatpush2.msra.mxu0 0.0
        %420 = vmatprep.subr.mxu0 0.0
        %421 = vmatpush2.msra.mxu0 0.0
        %422 = vmatprep.subr.mxu0 0.0
        %423 = vmatpush2.msra.mxu0 0.0
        %424 = vmatprep.subr.mxu0 0.0
        %425 = vmatpush2.msra.mxu0 0.0
        %426 = vmatprep.subr.mxu0 0.0
        %427 = vmatpush2.msra.mxu0 0.0
        %428 = vmatprep.subr.mxu0 0.0
        %429 = vmatpush2.msra.mxu0 0.0
        %430 = vmatprep.subr.mxu0 0.0
        %431 = vmatpush2.msra.mxu0 0.0
        %432 = vmatprep.subr.mxu0 0.0
        %433 = vmatpush2.msra.mxu0 0.0
        %434 = vmatprep.subr.mxu0 0.0
        %435 = vmatpush2.msra.mxu0 0.0
        %436 = vmatprep.subr.mxu0 0.0
        %437 = vmatpush2.msra.mxu0 0.0
        %438 = vmatprep.subr.mxu0 0.0
        %439 = vmatpush2.msra.mxu0 0.0
        %440 = vmatprep.subr.mxu0 0.0
        %441 = vmatpush2.msra.mxu0 0.0
        %442 = vmatprep.subr.mxu0 0.0
        %443 = vmatpush2.msra.mxu0 0.0
        %444 = vmatprep.subr.mxu0 0.0
        %445 = vmatpush2.msra.mxu0 0.0
        %446 = vmatprep.mubr.f32.mxu0 0.0
        %447 = vmatmul.mubr.f32.gmra.mxu0 %v380
        %v448 = vpop.f32.mrf.mxu0
        %v449 = vadd.f32 %v377, %v448
        %v450 = vpop.f32.mrf.mxu0
        %451 = vdwg.mxu0
        %v452 = vmax.f32 %v449, 0.0
        %vm453 = vcmask 261248
        %v454 = vsel %vm453, %v449, 0.0
        %v455 = vrot.slane %v454, 4
        %v456 = vadd.f32 %v454, %v455
        %v457 = vrot.slane %v456, 2
        %v458 = vadd.f32 %v456, %v457
        %v459 = vrot.slane %v458, 1
        %v460 = vadd.f32 %v458, %v459
        %v461 = vmul.f32 %v460, 0.125
        %v462 = vmax.f32 %v461, 0.0
        %464 = vrot.lane.b32.xlu0 %v462, 112
        %v465 = vpop.permute.xlu0 %464
        %v467 = vsel %vm299, %v452, 0
        %v469 = vsel %vm299, %v465, 0
        %471 = vmatprep.subr.mxu0 0.0
        %472 = vmatpush1.msra.mxu0 0.0
        %473 = vmatprep.subr.mxu0 0.0
        %474 = vmatpush1.msra.mxu0 0.0
        %475 = vmatprep.subr.mxu0 0.0
        %476 = vmatpush1.msra.mxu0 0.0
        %477 = vmatprep.subr.mxu0 0.0
        %478 = vmatpush1.msra.mxu0 0.0
        %479 = vmatprep.subr.mxu0 0.0
        %480 = vmatpush1.msra.mxu0 0.0
        %481 = vmatprep.subr.mxu0 0.0
        %482 = vmatpush1.msra.mxu0 0.0
        %483 = vmatprep.subr.mxu0 0.0
        %484 = vmatpush1.msra.mxu0 0.0
        %485 = vmatprep.subr.mxu0 0.0
        %486 = vmatpush1.msra.mxu0 0.0
        %487 = vmatprep.subr.mxu0 0.0
        %488 = vmatpush1.msra.mxu0 0.0
        %489 = vmatprep.subr.mxu0 0.0
        %490 = vmatpush1.msra.mxu0 0.0
        %491 = vmatprep.subr.mxu0 0.0
        %492 = vmatpush1.msra.mxu0 0.0
        %493 = vmatprep.subr.mxu0 0.0
        %494 = vmatpush1.msra.mxu0 0.0
        %495 = vmatprep.subr.mxu0 0.0
        %496 = vmatpush1.msra.mxu0 0.0
        %497 = vmatprep.subr.mxu0 0.0
        %498 = vmatpush1.msra.mxu0 0.0
        %499 = vmatprep.subr.mxu0 0.0
        %500 = vmatpush1.msra.mxu0 %v218
        %501 = vmatprep.subr.mxu0 0.0
        %502 = vmatpush1.msra.mxu0 %v217
        %503 = vmatprep.subr.mxu0 0.0
        %504 = vmatpush2.msra.mxu0 0.0
        %505 = vmatprep.subr.mxu0 0.0
        %506 = vmatpush2.msra.mxu0 0.0
        %507 = vmatprep.subr.mxu0 0.0
        %508 = vmatpush2.msra.mxu0 0.0
        %509 = vmatprep.subr.mxu0 0.0
        %510 = vmatpush2.msra.mxu0 0.0
        %511 = vmatprep.subr.mxu0 0.0
        %512 = vmatpush2.msra.mxu0 0.0
        %513 = vmatprep.subr.mxu0 0.0
        %514 = vmatpush2.msra.mxu0 0.0
        %515 = vmatprep.subr.mxu0 0.0
        %516 = vmatpush2.msra.mxu0 0.0
        %517 = vmatprep.subr.mxu0 0.0
        %518 = vmatpush2.msra.mxu0 0.0
        %519 = vmatprep.subr.mxu0 0.0
        %520 = vmatpush2.msra.mxu0 0.0
        %521 = vmatprep.subr.mxu0 0.0
        %522 = vmatpush2.msra.mxu0 0.0
        %523 = vmatprep.subr.mxu0 0.0
        %524 = vmatpush2.msra.mxu0 0.0
        %525 = vmatprep.subr.mxu0 0.0
        %526 = vmatpush2.msra.mxu0 0.0
        %527 = vmatprep.subr.mxu0 0.0
        %528 = vmatpush2.msra.mxu0 0.0
        %529 = vmatprep.subr.mxu0 0.0
        %530 = vmatpush2.msra.mxu0 0.0
        %531 = vmatprep.subr.mxu0 0.0
        %532 = vmatpush2.msra.mxu0 0.0
        %533 = vmatprep.subr.mxu0 0.0
        %534 = vmatpush2.msra.mxu0 0.0
        %535 = vmatprep.mubr.f32.mxu0 0.0
        %536 = vmatmul.mubr.f32.gmra.mxu0 %v467
        %v537 = vpop.f32.mrf.mxu0
        %v538 = vadd.f32 0.0, %v537
        %v539 = vpop.f32.mrf.mxu0
        %540 = vmatprep.mubr.f32.mxu0 0.0
        %541 = vmatmul.mubr.f32.gmra.mxu0 %v469
        %v542 = vpop.f32.mrf.mxu0
        %v543 = vadd.f32 0.0, %v542
        %v544 = vpop.f32.mrf.mxu0
        %545 = vdwg.mxu0
        %v546 = vlaneseq
        %v547 = vshrl.u32 %v546, 7
        %v548 = vsub.s32 0, %v547
        %v549 = vrot.slane %v221, %v548
        %v550 = vadd.f32 %v538, %v549
        %v551 = vadd.f32 %v543, %v221
        %vm552 = vcmask 31744
        %v553 = vsel %vm552, %v550, -inf
        %554 = vmax.xlane.f32.xlu0 %v553
        %v555 = vpop.xlane.xlu0 %554
        %v556 = vrot.slane %v555, 4
        %v557 = vmax.f32 %v555, %v556
        %v558 = vrot.slane %v557, 2
        %v559 = vmax.f32 %v557, %v558
        %v560 = vrot.slane %v559, 1
        %v561 = vmax.f32 %v559, %v560
        %s562 = vtos %v561
        %v563 = vstv %s562
        %v564 = vsub.f32 %v550, %v563
        %v565 = vmul.f32 %v564, 1.442695
        %v566 = vpow.pop %v565
        %v567 = vsel %vm552, %v566, 0.0
        %568 = vadd.xlane.f32.xlu0 %v567
        %v569 = vpop.xlane.xlu0 %568
        %v570 = vrot.slane %v569, 4
        %v571 = vadd.f32 %v569, %v570
        %v572 = vrot.slane %v571, 2
        %v573 = vadd.f32 %v571, %v572
        %v574 = vrot.slane %v573, 1
        %v575 = vadd.f32 %v573, %v574
        %s576 = vtos %v575
        %v577 = vstv %s576
        %v578 = vrcp.pop %v577
        %v579 = vmul.f32 %v566, %v578
        %v580 = vsel %vm552, %v579, 0.0
        %v581 = vlaneseq
        %v582 = vshrl.u32 %v581, 7
        %v583 = vlaneseq
        %v584 = vand.u32 %v583, 127
        %vm585 = vcmp.eq.s32.totalorder %v582, 0
        %vm586 = vcmp.eq.s32.totalorder %v584, 127
        %vm587 = vmand %vm585, %vm586
        %589 = vrot.lane.b32.xlu0 %v551, 124
        %v590 = vpop.permute.xlu0 %589
        %s591 = vtos %v590
        %v592 = vstv %s591
        %v594 = vsel %vm587, %v592, %v580
        %595 = vst [vmem:[%s202] sm:$0xff] %v594
        %p596 = scmp.lt.s32.totalorder %s17, 3
        %s597 = scalar_select %p596, %s17, 3
        %s598 = smul.addr %s597, 8
        %s599 = scalar_lea.vmem %s3, %s598
        // Predicated region
        $region37: #{ppo_gnn_forward_batch.1} parent=31 // pred_check
          %p600 = pneg %p108
        $region38: #{ppo_gnn_forward_batch.1} parent=31 // pred_check_branch
          %602 = sbr.rel (%p600) target = $region40
        $region39: #{ppo_gnn_forward_batch.1} parent=31 // pred_region
          _
        $region40: #{ppo_gnn_forward_batch.1} parent=31 // pred_fallthru
          _
      $region32: #{ppo_gnn_forward_batch.1} parent=5 // pred_fallthru
        _
      %p603 = scmp.le.s32.totalorder 2, %s12
      // Predicated region
      $region41: #{ppo_gnn_forward_batch.1} parent=5 // pred_check
        %p604 = pneg %p603
      $region42: #{ppo_gnn_forward_batch.1} parent=5 // pred_check_branch
        %606 = sbr.rel (%p604) target = $region44
      $region43: #{ppo_gnn_forward_batch.1} parent=5 // pred_region
        %s607 = ssub.s32 %s12, 2
        // Predicated region
        $region45: #{ppo_gnn_forward_batch.1} parent=43 // pred_check
          %p608 = pneg %p114
        $region46: #{ppo_gnn_forward_batch.1} parent=43 // pred_check_branch
          %610 = sbr.rel (%p608) target = $region48
        $region47: #{ppo_gnn_forward_batch.1} parent=43 // pred_region
          %p611 = scmp.lt.s32.totalorder %s18, 3
          %s612 = scalar_select %p611, %s18, 3
          %s613 = smul.addr %s612, 8
          %s614 = scalar_lea.vmem %s3, %s613
        $region48: #{ppo_gnn_forward_batch.1} parent=43 // pred_fallthru
          _
      $region44: #{ppo_gnn_forward_batch.1} parent=5 // pred_fallthru
        _
    $region6: #{ppo_gnn_forward_batch.1} parent=1 // loop_footer
      %s16 = sadd.s32 1, %s12
    $region7: #{ppo_gnn_forward_batch.1} parent=1 // loop_footer_branch
      %11 = sbr.rel target = $region3
    $region8: #{ppo_gnn_forward_batch.1} parent=1 // loop_exit
      _
    %615 = vsyncpa [#allocation3], 1
    %s616 = scalar_lea.sflag [#allocation3], 1
    %617 = vsyncpa %s616, 1

</llo_original>
